<compile_context>
chip_gen: v7x
topology: tpu7x:2x2x1
jax: 0.10.0
libtpu: 0.0.40
codegen_flags: <defaults>
</compile_context>

<pallas_src>
import functools

import jax
import jax.numpy as jnp
from jax import lax
from jax.experimental import pallas as pl
from jax.experimental.pallas import tpu as pltpu


# --------------------------------------------------------------------------
# VMEM budgeting (generation aware: v7x has 64 MiB/TC, v5e/v6e have 128 MiB).
# --------------------------------------------------------------------------
def _vmem_budget_bytes():
    cap = None
    try:
        info = pltpu.get_tpu_info()
        for name in ("vmem_capacity_bytes", "vmem_size_bytes", "vmem_bytes"):
            v = getattr(info, name, None)
            if v:
                cap = int(v)
                break
    except Exception:
        cap = None
    if cap is None:
        cap = 64 << 20  # conservative fallback: v7x per-TC VMEM
    # Leave headroom for compiler-internal scratch; cap so v5e/v6e stay sane.
    return max(32 << 20, min(cap - (16 << 20), 96 << 20))


def _choose_s_tile(C, S, itemsize, budget_bytes, cap=8192):
    """Largest lane-dense (multiple-of-128) spatial tile for the streaming
    passes.  The binding constraint is pass 2: 2 double-buffered input + 2
    double-buffered output (C, tS) tiles in x's dtype."""
    per_lane = 4 * C * itemsize
    t = int(budget_bytes * 0.8) // max(per_lane, 1)
    t = max(128, min(cap, (t // 128) * 128))
    if S <= t:
        return S  # full-extent block (always legal), single S step
    return t


# --------------------------------------------------------------------------
# Shared in-kernel MLP: v is a (C, 1) column; w1: (Ch, C), w2: (C, Ch)
# (torch Linear weight layout).  hid = relu(w1 @ v); y = w2 @ hid.
# --------------------------------------------------------------------------
def _mlp(w1, w2, v):
    hid = jnp.maximum(jnp.dot(w1, v, preferred_element_type=jnp.float32), 0.0)
    return jnp.dot(w2, hid, preferred_element_type=jnp.float32)


# --------------------------------------------------------------------------
# Fused single-pass kernel: grid=(B,), per-batch (C, S) slab resident in VMEM.
# --------------------------------------------------------------------------
def _fused_kernel(x_ref, w1_ref, w2_ref, o_ref, *, s_total):
    x = x_ref[0]                                        # (C, S), input dtype
    xf = x.astype(jnp.float32)
    mean = jnp.sum(xf, axis=-1, keepdims=True) * jnp.float32(1.0 / s_total)
    mx = jnp.max(xf, axis=-1, keepdims=True)            # (C, 1)
    w1 = w1_ref[...]
    w2 = w2_ref[...]
    att = jax.nn.sigmoid(_mlp(w1, w2, mean) + _mlp(w1, w2, mx))   # (C, 1)
    # Multiply in the input dtype (bf16 stays bf16 on v6e/v7x).
    o_ref[0] = (x * att.astype(x.dtype)).astype(o_ref.dtype)


# --------------------------------------------------------------------------
# Two-pass path, pass 1: streaming sum/max + fused MLP epilogue -> att (B,C,1)
# --------------------------------------------------------------------------
def _reduce_mlp_kernel(x_ref, w1_ref, w2_ref, att_ref, acc_sum, acc_max, *,
                       s_tile, s_total, n_s):
    s = pl.program_id(1)
    x = x_ref[0].astype(jnp.float32)                    # (C, tS)
    ragged = (s_total % s_tile) != 0                    # trace-time bool

    def tile_stats(xs, xm):
        # Per-tile reduce to (C, 1): keeps scratch tiny and avoids the
        # full-tile accumulator read-modify-write (store-slot relief on v5e).
        return (jnp.sum(xs, axis=-1, keepdims=True),
                jnp.max(xm, axis=-1, keepdims=True))

    def accum(ts, tm):
        @pl.when(s == 0)
        def _():
            acc_sum[...] = ts
            acc_max[...] = tm

        @pl.when(s > 0)
        def _():
            acc_sum[...] = acc_sum[...] + ts
            acc_max[...] = jnp.maximum(acc_max[...], tm)

    if ragged:
        # Mask is only materialized on the ragged last tile; full tiles take
        # the unmasked path (no per-element iota/where on the hot steps).
        @pl.when(s < n_s - 1)
        def _():
            accum(*tile_stats(x, x))

        @pl.when(s == n_s - 1)
        def _():
            # int32 lane index is fine (S < 2^31 per (b, c) row in practice).
            lane = lax.broadcasted_iota(jnp.int32, x.shape, 1) + (n_s - 1) * s_tile
            valid = lane < s_total
            accum(*tile_stats(jnp.where(valid, x, 0.0),
                              jnp.where(valid, x, -jnp.inf)))
    else:
        accum(*tile_stats(x, x))

    # Tiny shared MLP + sigmoid fused into the last S step (no XLA round-trip
    # between the two streaming passes).
    @pl.when(s == n_s - 1)
    def _():
        w1 = w1_ref[...]
        w2 = w2_ref[...]
        mean = acc_sum[...] * jnp.float32(1.0 / s_total)            # (C, 1)
        att_ref[0] = jax.nn.sigmoid(_mlp(w1, w2, mean) +
                                    _mlp(w1, w2, acc_max[...]))     # (C, 1)


# --------------------------------------------------------------------------
# Two-pass path, pass 2: stream x again and scale by the per-(B, C) attention.
# --------------------------------------------------------------------------
def _apply_kernel(x_ref, att_ref, o_ref):
    x = x_ref[0]                                        # (C, tS), input dtype
    o_ref[0] = (x * att_ref[0].astype(x.dtype)).astype(o_ref.dtype)


# --------------------------------------------------------------------------
# Wrapper
# --------------------------------------------------------------------------
def channel_attention(x, w1, w2, *, s_tile=None, force_two_pass=False):
    """x: (B, C, D, H, W); w1: (C//r, C); w2: (C, C//r) (torch Linear layout)."""
    B, C, D, H, W = x.shape
    Ch = w1.shape[0]
    S = D * H * W
    x2 = x.reshape(B, C, S)
    itemsize = x2.dtype.itemsize
    budget = _vmem_budget_bytes()
    vmem_limit = budget

    w1f = w1.astype(jnp.float32)
    w2f = w2.astype(jnp.float32)

    slab_bytes = C * S * itemsize
    bytes_x = B * slab_bytes
    # Fused path needs ~2 in + 2 out (C, S) slabs (+ an f32 temp if casting).
    fused_need = 4 * slab_bytes + (C * S * 4 if x2.dtype != jnp.float32 else 0)
    use_fused = (s_tile is None) and (not force_two_pass) and \
                (fused_need <= int(budget * 0.8))

    if use_fused:
        out = pl.pallas_call(
            functools.partial(_fused_kernel, s_total=S),
            out_shape=jax.ShapeDtypeStruct((B, C, S), x.dtype),
            grid_spec=pltpu.PrefetchScalarGridSpec(
                num_scalar_prefetch=0,
                grid=(B,),
                in_specs=[
                    pl.BlockSpec((1, C, S), lambda b: (b, 0, 0)),
                    pl.BlockSpec((Ch, C), lambda b: (0, 0)),
                    pl.BlockSpec((C, Ch), lambda b: (0, 0)),
                ],
                out_specs=pl.BlockSpec((1, C, S), lambda b: (b, 0, 0)),
            ),
            compiler_params=pltpu.CompilerParams(
                dimension_semantics=("parallel",),
                vmem_limit_bytes=vmem_limit,
            ),
            cost_estimate=pl.CostEstimate(
                flops=3 * B * C * S, transcendentals=B * C,
                bytes_accessed=2 * bytes_x),
        )(x2, w1f, w2f)
        return out.reshape(B, C, D, H, W)

    # ------------------ two-pass streaming path ------------------
    if s_tile is None:
        s_tile = _choose_s_tile(C, S, itemsize, budget)
    assert s_tile == S or s_tile % 128 == 0, "s_tile must be full-extent or a multiple of 128"
    n_s = -(-S // s_tile)

    # Pass 1: streaming global sum/max + fused MLP epilogue -> att (B, C, 1).
    att = pl.pallas_call(
        functools.partial(_reduce_mlp_kernel, s_tile=s_tile, s_total=S, n_s=n_s),
        out_shape=jax.ShapeDtypeStruct((B, C, 1), jnp.float32),
        grid_spec=pltpu.PrefetchScalarGridSpec(
            num_scalar_prefetch=0,
            grid=(B, n_s),
            in_specs=[
                pl.BlockSpec((1, C, s_tile), lambda b, s: (b, 0, s)),
                pl.BlockSpec((Ch, C), lambda b, s: (0, 0)),
                pl.BlockSpec((C, Ch), lambda b, s: (0, 0)),
            ],
            out_specs=pl.BlockSpec((1, C, 1), lambda b, s: (b, 0, 0)),
            scratch_shapes=[
                pltpu.VMEM((C, 1), jnp.float32),
                pltpu.VMEM((C, 1), jnp.float32),
            ],
        ),
        compiler_params=pltpu.CompilerParams(
            dimension_semantics=("parallel", "arbitrary"),
            vmem_limit_bytes=vmem_limit,
        ),
        cost_estimate=pl.CostEstimate(
            flops=2 * B * C * S, transcendentals=B * C,
            bytes_accessed=bytes_x + B * C * 4),
    )(x2, w1f, w2f)

    # Pass 2: stream x again and scale by the per-(B, C) attention.
    out = pl.pallas_call(
        _apply_kernel,
        out_shape=jax.ShapeDtypeStruct((B, C, S), x.dtype),
        grid_spec=pltpu.PrefetchScalarGridSpec(
            num_scalar_prefetch=0,
            grid=(B, n_s),
            in_specs=[
                pl.BlockSpec((1, C, s_tile), lambda b, s: (b, 0, s)),
                pl.BlockSpec((1, C, 1), lambda b, s: (b, 0, 0)),
            ],
            out_specs=pl.BlockSpec((1, C, s_tile), lambda b, s: (b, 0, s)),
        ),
        compiler_params=pltpu.CompilerParams(
            dimension_semantics=("parallel", "parallel"),
            vmem_limit_bytes=vmem_limit,
        ),
        cost_estimate=pl.CostEstimate(
            flops=B * C * S, transcendentals=0,
            bytes_accessed=2 * bytes_x),
    )(x2, att)
    return out.reshape(B, C, D, H, W)


# --------------------------------------------------------------------------
# Plain-JAX reference mirroring the PyTorch forward.
# --------------------------------------------------------------------------
def channel_attention_ref(x, w1, w2):
    B, C = x.shape[:2]
    xf = x.reshape(B, C, -1)
    avg = jnp.mean(xf, axis=-1)                        # (B, C)
    mx = jnp.max(xf, axis=-1)                          # (B, C)

    def mlp(v):
        return jnp.maximum(v @ w1.T, 0.0) @ w2.T

    att = jax.nn.sigmoid(mlp(avg) + mlp(mx))           # (B, C)
    return x * att[:, :, None, None, None]


if __name__ == "__main__":
    # Shapes consistent with the module: 5D input (B, C, D, H, W),
    # in_channels=32, reduction_ratio=16 -> hidden=2.
    B, C = 2, 32
    reduction_ratio = 16
    Ch = C // reduction_ratio

    key = jax.random.PRNGKey(0)
    kx, kw1, kw2 = jax.random.split(key, 3)

    # S = 4*8*9 = 288: deliberately NOT a multiple of 128 to exercise the
    # full-extent block and the ragged-tile masked-reduce paths.
    D, H, W = 4, 8, 9
    x = jax.random.normal(kx, (B, C, D, H, W), dtype=jnp.float32)
    w1 = jax.random.normal(kw1, (Ch, C), dtype=jnp.float32) * 0.1
    w2 = jax.random.normal(kw2, (C, Ch), dtype=jnp.float32) * 0.1

    ref = channel_attention_ref(x, w1, w2)

    # Config 1: fused single-pass path (per-batch slab fits VMEM).
    out_fused = jax.block_until_ready(channel_attention(x, w1, w2))
    assert out_fused.shape == (B, C, D, H, W)
    assert jnp.allclose(out_fused, ref, atol=1e-4, rtol=1e-4), \
        "mismatch vs reference (fused path)"

    # Config 2: two-pass path with a single full-extent S block (S % 128 != 0).
    out_tp = jax.block_until_ready(
        channel_attention(x, w1, w2, force_two_pass=True))
    assert jnp.allclose(out_tp, ref, atol=1e-4, rtol=1e-4), \
        "mismatch vs reference (two-pass, full-extent)"

    # Config 3: two-pass path with S-tiling (tile=128, ragged last tile) to
    # exercise the multi-step accumulate + masked-last-tile path used for
    # large 3D feature maps.
    out_tiled = jax.block_until_ready(channel_attention(x, w1, w2, s_tile=128))
    assert jnp.allclose(out_tiled, ref, atol=1e-4, rtol=1e-4), \
        "mismatch vs reference (two-pass, tiled S)"

    print("KERNEL_OK")
</pallas_src>

<mosaic_0001>
module attributes {stable_mosaic.version = 11 : i64} {
  func.func @_fused_kernel(%arg0: i32, %arg1: memref<1x32x288xf32, #tpu.memory_space<vmem>>, %arg2: memref<2x32xf32, #tpu.memory_space<vmem>>, %arg3: memref<32x2xf32, #tpu.memory_space<vmem>>, %arg4: memref<1x32x288xf32, #tpu.memory_space<vmem>>) attributes {dimension_semantics = [#tpu.dimension_semantics<parallel>], iteration_bounds = array<i64: 2>, scalar_prefetch = 0 : i64, scratch_operands = 0 : i64, tpu.core_type = #tpu.core_type<tc>, window_params = [{transform_indices = @transform_0, window_bounds = array<i64: 1, 32, 288>}, {pipeline_mode = #tpu.pipeline_mode<synchronous>, transform_indices = @transform_1, window_bounds = array<i64: 2, 32>}, {pipeline_mode = #tpu.pipeline_mode<synchronous>, transform_indices = @transform_2, window_bounds = array<i64: 32, 2>}, {transform_indices = @transform_3, window_bounds = array<i64: 1, 32, 288>}]} {
    %c0 = arith.constant 0 : index
    %c0_0 = arith.constant 0 : index
    %c0_1 = arith.constant 0 : index
    %0 = vector.load %arg1[%c0, %c0_0, %c0_1] : memref<1x32x288xf32, #tpu.memory_space<vmem>>, vector<1x32x288xf32>
    %1 = vector.shape_cast %0 : vector<1x32x288xf32> to vector<32x288xf32>
    %cst = arith.constant dense<0.000000e+00> : vector<32xf32>
    %2 = vector.multi_reduction <add>, %1, %cst [1] : vector<32x288xf32> to vector<32xf32>
    %3 = vector.shape_cast %2 : vector<32xf32> to vector<32x1xf32>
    %cst_2 = arith.constant 0.00347222225 : f32
    %4 = vector.broadcast %cst_2 : f32 to vector<32x1xf32>
    %5 = arith.mulf %3, %4 : vector<32x1xf32>
    %cst_3 = arith.constant dense<0xFF800000> : vector<32xf32>
    %6 = vector.multi_reduction <maximumf>, %1, %cst_3 [1] : vector<32x288xf32> to vector<32xf32>
    %7 = vector.shape_cast %6 : vector<32xf32> to vector<32x1xf32>
    %c0_4 = arith.constant 0 : index
    %c0_5 = arith.constant 0 : index
    %8 = vector.load %arg2[%c0_4, %c0_5] : memref<2x32xf32, #tpu.memory_space<vmem>>, vector<2x32xf32>
    %c0_6 = arith.constant 0 : index
    %c0_7 = arith.constant 0 : index
    %9 = vector.load %arg3[%c0_6, %c0_7] : memref<32x2xf32, #tpu.memory_space<vmem>>, vector<32x2xf32>
    %cst_8 = arith.constant dense<0.000000e+00> : vector<2x1xf32>
    %10 = tpu.matmul %8, %5, %cst_8 {dimension_numbers = #tpu.dot_dimension_numbers<[1], [0], [0], [1], [0, 0, 1, 1], [], []>} : vector<2x32xf32>, vector<32x1xf32>, vector<2x1xf32> -> vector<2x1xf32>
    %cst_9 = arith.constant 0.000000e+00 : f32
    %11 = vector.broadcast %cst_9 : f32 to vector<2x1xf32>
    %12 = arith.maximumf %10, %11 : vector<2x1xf32>
    %cst_10 = arith.constant dense<0.000000e+00> : vector<32x1xf32>
    %13 = tpu.matmul %9, %12, %cst_10 {dimension_numbers = #tpu.dot_dimension_numbers<[1], [0], [0], [1], [0, 0, 1, 1], [], []>} : vector<32x2xf32>, vector<2x1xf32>, vector<32x1xf32> -> vector<32x1xf32>
    %cst_11 = arith.constant dense<0.000000e+00> : vector<2x1xf32>
    %14 = tpu.matmul %8, %7, %cst_11 {dimension_numbers = #tpu.dot_dimension_numbers<[1], [0], [0], [1], [0, 0, 1, 1], [], []>} : vector<2x32xf32>, vector<32x1xf32>, vector<2x1xf32> -> vector<2x1xf32>
    %cst_12 = arith.constant 0.000000e+00 : f32
    %15 = vector.broadcast %cst_12 : f32 to vector<2x1xf32>
    %16 = arith.maximumf %14, %15 : vector<2x1xf32>
    %cst_13 = arith.constant dense<0.000000e+00> : vector<32x1xf32>
    %17 = tpu.matmul %9, %16, %cst_13 {dimension_numbers = #tpu.dot_dimension_numbers<[1], [0], [0], [1], [0, 0, 1, 1], [], []>} : vector<32x2xf32>, vector<2x1xf32>, vector<32x1xf32> -> vector<32x1xf32>
    %18 = arith.addf %13, %17 : vector<32x1xf32>
    %19 = arith.negf %18 : vector<32x1xf32>
    %20 = math.exp %19 : vector<32x1xf32>
    %cst_14 = arith.constant 1.000000e+00 : f32
    %21 = vector.broadcast %cst_14 : f32 to vector<32x1xf32>
    %22 = arith.addf %21, %20 : vector<32x1xf32>
    %23 = arith.divf %21, %22 : vector<32x1xf32>
    %24 = vector.broadcast %23 : vector<32x1xf32> to vector<32x288xf32>
    %25 = arith.mulf %1, %24 : vector<32x288xf32>
    %c0_15 = arith.constant 0 : index
    %c0_16 = arith.constant 0 : index
    %c0_17 = arith.constant 0 : index
    %26 = vector.load %arg4[%c0_15, %c0_16, %c0_17] : memref<1x32x288xf32, #tpu.memory_space<vmem>>, vector<1x32x288xf32>
    %27 = vector.shape_cast %26 : vector<1x32x288xf32> to vector<32x288xf32>
    %28 = vector.shape_cast %25 : vector<32x288xf32> to vector<1x32x288xf32>
    tpu.vector_store %arg4[%c0_15, %c0_16, %c0_17], %28 {strides = array<i32>} : memref<1x32x288xf32, #tpu.memory_space<vmem>>, vector<1x32x288xf32>,
    return
  }
  func.func @transform_0(%arg0: i32) -> (i32, i32, i32) {
    %c0_i32 = arith.constant 0 : i32
    %c0_i32_0 = arith.constant 0 : i32
    %c0_i32_1 = arith.constant 0 : i32
    return %arg0, %c0_i32, %c0_i32_0 : i32, i32, i32
  }
  func.func @transform_1(%arg0: i32) -> (i32, i32) {
    %c0_i32 = arith.constant 0 : i32
    %c0_i32_0 = arith.constant 0 : i32
    %c0_i32_1 = arith.constant 0 : i32
    return %c0_i32, %c0_i32_0 : i32, i32
  }
  func.func @transform_2(%arg0: i32) -> (i32, i32) {
    %c0_i32 = arith.constant 0 : i32
    %c0_i32_0 = arith.constant 0 : i32
    %c0_i32_1 = arith.constant 0 : i32
    return %c0_i32, %c0_i32_0 : i32, i32
  }
  func.func @transform_3(%arg0: i32) -> (i32, i32, i32) {
    %c0_i32 = arith.constant 0 : i32
    %c0_i32_0 = arith.constant 0 : i32
    %c0_i32_1 = arith.constant 0 : i32
    return %arg0, %c0_i32, %c0_i32_0 : i32, i32, i32
  }
}

</mosaic_0001>

<llo_original>
// kernel: tpu_custom_call.1
$region0: #{tpu_custom_call.1}
  #allocation0 [shape = 'u32[]', space=smem, size = 0x4, offset = 0x4, fixed_abs, tag = 'smem constant byte address 0x4 - core index']
  #allocation1 [shape = 'u32[144,128]{1,0:T(1,128)}', space=vmem, size = 0x12000, scoped, tag = 'internal scratch']
  %s0 = inlined_call_operand.hbm [shape: f32[2,32,288], index: 0, kind: input, shape index: {}]
  %s1 = inlined_call_operand.vmem [shape: f32[2,32], index: 1, kind: input, shape index: {}]
  %s2 = inlined_call_operand.vmem [shape: f32[32,2], index: 2, kind: input, shape index: {}]
  %s3 = inlined_call_operand.hbm [shape: f32[2,32,288], index: 3, kind: output, shape index: {}]
  %s4 = sld [smem:[#allocation0]]
  $region49: #{tpu_custom_call.1} parent=0
    _
  %s6 = ssub.s32 1, %s4
  %s7 = scalar_select 0, %s6, %s4
  $region1: #{tpu_custom_call.1} parent=0
    #allocation2 [shape = 'u8[98304]{0}', space=vmem, size = 0x18000, scoped, tag = 'input window, operand 0']
    #allocation3 [shape = 's32[2]{0}', space=sflag, size = 0x8, scoped, tag = 'scoped memory for tpu_custom_call.1']
    #allocation4 [shape = 's32[2]{0}', space=sflag, size = 0x8, scoped, tag = 'scoped memory for tpu_custom_call.1']
    #allocation5 [shape = 'u8[98304]{0}', space=vmem, size = 0x18000, scoped, tag = 'output window, operand 0']
    %8 = vsyncpa [#allocation3], 0
    %s9 = scalar_lea.sflag [#allocation3], 1
    %10 = vsyncpa %s9, 0
    %11 = vsyncpa [#allocation4], 0
    %s12 = scalar_lea.sflag [#allocation4], 1
    %13 = vsyncpa %s12, 0
    loop: start=0, step=1, limit=4
    $region2: #{tpu_custom_call.1} parent=1 // loop_pre_header
      _
    $region3: #{tpu_custom_call.1} parent=1 // loop_header
      %s15 = sphi 0, %s19
      %p16 = scmp.ge.s32.totalorder %s15, 4
      %s25 = sphi 0, %s27
      %s28 = sphi 0, %s25
      %s29 = sphi 0, %s28
      %s45 = sphi 0, %s29
      %s49 = sphi 0, %s49
      %s51 = sphi 0, %s49
      %s52 = sphi 0, %s51
      %s66 = sphi 0, %s52
      %s70 = sphi 0, %s70
      %s72 = sphi 0, %s70
      %s73 = sphi 0, %s72
      %s87 = sphi 0, %s73
      %s93 = sphi 0, %s95
      %s96 = sphi 0, %s93
      %s97 = sphi 0, %s96
      %s113 = sphi 0, %s97
    $region4: #{tpu_custom_call.1} parent=1 // loop_header_branch
      %18 = sbr.rel (%p16) target = $region8
    $region5: #{tpu_custom_call.1} parent=1 // loop_body
      %s20 = ssub.s32 %s15, 1
      %s21 = ssub.s32 %s15, 2
      %s22 = sadd.s32 %s15, 1
      %s23 = ssub.s32 %s15, %s22
      %p24 = scmp.eq.s32.totalorder %s23, 0
      %s26 = sadd.s32 %s25, 1
      %s27 = scalar_select %p24, %s25, %s26
      %p30 = pneg %p24
      %p31 = scmp.eq.s32.totalorder %s15, 1
      %p32 = por %p30, %p31
      %p33 = scmp.ne.s32.totalorder %s25, %s28
      %p34 = scmp.eq.s32.totalorder %s15, 0
      %p35 = por %p33, %p34
      %p36 = scmp.ne.s32.totalorder %s25, %s28
      %p37 = scmp.eq.s32.totalorder %s20, 1
      %p38 = por %p36, %p37
      %p39 = scmp.ne.s32.totalorder %s28, %s29
      %p40 = scmp.eq.s32.totalorder %s20, 0
      %p41 = por %p39, %p40
      %p42 = scmp.ne.s32.totalorder %s28, %s29
      %p43 = scmp.eq.s32.totalorder %s21, 1
      %p44 = por %p42, %p43
      %p46 = scmp.ne.s32.totalorder %s29, %s45
      %p47 = scmp.eq.s32.totalorder %s21, 0
      %p48 = por %p46, %p47
      %s50 = sadd.s32 %s49, 1
      %p53 = scmp.eq.s32.totalorder %s15, 1
      %p54 = scmp.ne.s32.totalorder %s49, %s51
      %p55 = scmp.eq.s32.totalorder %s15, 0
      %p56 = por %p54, %p55
      %p57 = scmp.ne.s32.totalorder %s49, %s51
      %p58 = scmp.eq.s32.totalorder %s20, 1
      %p59 = por %p57, %p58
      %p60 = scmp.ne.s32.totalorder %s51, %s52
      %p61 = scmp.eq.s32.totalorder %s20, 0
      %p62 = por %p60, %p61
      %p63 = scmp.ne.s32.totalorder %s51, %s52
      %p64 = scmp.eq.s32.totalorder %s21, 1
      %p65 = por %p63, %p64
      %p67 = scmp.ne.s32.totalorder %s52, %s66
      %p68 = scmp.eq.s32.totalorder %s21, 0
      %p69 = por %p67, %p68
      %s71 = sadd.s32 %s70, 1
      %p74 = scmp.eq.s32.totalorder %s15, 1
      %p75 = scmp.ne.s32.totalorder %s70, %s72
      %p76 = scmp.eq.s32.totalorder %s15, 0
      %p77 = por %p75, %p76
      %p78 = scmp.ne.s32.totalorder %s70, %s72
      %p79 = scmp.eq.s32.totalorder %s20, 1
      %p80 = por %p78, %p79
      %p81 = scmp.ne.s32.totalorder %s72, %s73
      %p82 = scmp.eq.s32.totalorder %s20, 0
      %p83 = por %p81, %p82
      %p84 = scmp.ne.s32.totalorder %s72, %s73
      %p85 = scmp.eq.s32.totalorder %s21, 1
      %p86 = por %p84, %p85
      %p88 = scmp.ne.s32.totalorder %s73, %s87
      %p89 = scmp.eq.s32.totalorder %s21, 0
      %p90 = por %p88, %p89
      %s91 = ssub.s32 %s15, %s22
      %p92 = scmp.eq.s32.totalorder %s91, 0
      %s94 = sadd.s32 %s93, 1
      %s95 = scalar_select %p92, %s93, %s94
      %p98 = pneg %p92
      %p99 = scmp.eq.s32.totalorder %s15, 1
      %p100 = por %p98, %p99
      %p101 = scmp.ne.s32.totalorder %s93, %s96
      %p102 = scmp.eq.s32.totalorder %s15, 0
      %p103 = por %p101, %p102
      %p104 = scmp.ne.s32.totalorder %s93, %s96
      %p105 = scmp.eq.s32.totalorder %s20, 1
      %p106 = por %p104, %p105
      %p107 = scmp.ne.s32.totalorder %s96, %s97
      %p108 = scmp.eq.s32.totalorder %s20, 0
      %p109 = por %p107, %p108
      %p110 = scmp.ne.s32.totalorder %s96, %s97
      %p111 = scmp.eq.s32.totalorder %s21, 1
      %p112 = por %p110, %p111
      %p114 = scmp.ne.s32.totalorder %s97, %s113
      %p115 = scmp.eq.s32.totalorder %s21, 0
      %p116 = por %p114, %p115
      %p117 = scmp.le.s32.totalorder 1, %s15
      %p118 = scmp.lt.s32.totalorder %s15, 3
      %p119 = pnand %p117, %p118
      %p120 = pneg %p119
      // Predicated region
      $region9: #{tpu_custom_call.1} parent=5 // pred_check
        _
      $region10: #{tpu_custom_call.1} parent=5 // pred_check_branch
        %122 = sbr.rel (%p119) target = $region12
      $region11: #{tpu_custom_call.1} parent=5 // pred_region
        %s123 = ssub.s32 %s15, 1
        // Predicated region
        $region13: #{tpu_custom_call.1} parent=11 // pred_check
          %p124 = pneg %p62
        $region14: #{tpu_custom_call.1} parent=11 // pred_check_branch
          %126 = sbr.rel (%p124) target = $region16
        $region15: #{tpu_custom_call.1} parent=11 // pred_region
          _
        $region16: #{tpu_custom_call.1} parent=11 // pred_fallthru
          _
        // Predicated region
        $region17: #{tpu_custom_call.1} parent=11 // pred_check
          %p127 = pneg %p83
        $region18: #{tpu_custom_call.1} parent=11 // pred_check_branch
          %129 = sbr.rel (%p127) target = $region20
        $region19: #{tpu_custom_call.1} parent=11 // pred_region
          _
        $region20: #{tpu_custom_call.1} parent=11 // pred_fallthru
          _
      $region12: #{tpu_custom_call.1} parent=5 // pred_fallthru
        _
      %p130 = scmp.lt.s32.totalorder %s15, 2
      // Predicated region
      $region21: #{tpu_custom_call.1} parent=5 // pred_check
        %p131 = pneg %p130
      $region22: #{tpu_custom_call.1} parent=5 // pred_check_branch
        %133 = sbr.rel (%p131) target = $region24
      $region23: #{tpu_custom_call.1} parent=5 // pred_region
        // Predicated region
        $region25: #{tpu_custom_call.1} parent=23 // pred_check
          %p134 = pneg %p35
        $region26: #{tpu_custom_call.1} parent=23 // pred_check_branch
          %136 = sbr.rel (%p134) target = $region28
        $region27: #{tpu_custom_call.1} parent=23 // pred_region
          %s137 = sand.u32 %s25, 1
          %s138 = scalar_lea.sflag [#allocation3], %s137
          %s139 = sand.u32 %s25, 1
          %s140 = smul.addr %s139, 96
          %s141 = scalar_lea.vmem [#allocation2], %s140
          %s143 = ssub.s32 1536, 1536
          %144 = vsyncadd %s138, %s143
          %s145 = smul.addr %s15, 12
          %s146 = smul.addr %s145, 128
          %s147 = scalar_lea.hbm %s0, %s146
          %s148 = sshll.u32 %s141, 4
          %s149 = int_to_ptr.vmem [resolvable:$true] %s148
          %154 = dma.hbm_to_vmem [thread:$0]  %s147, 1536, %s149, %s138, 384, 384, 24
        $region28: #{tpu_custom_call.1} parent=23 // pred_fallthru
          _
      $region24: #{tpu_custom_call.1} parent=5 // pred_fallthru
        _
      %p155 = scmp.le.s32.totalorder 1, %s15
      %p156 = scmp.lt.s32.totalorder %s15, 3
      %p157 = pnand %p155, %p156
      %p158 = pneg %p157
      // Predicated region
      $region29: #{tpu_custom_call.1} parent=5 // pred_check
        _
      $region30: #{tpu_custom_call.1} parent=5 // pred_check_branch
        %160 = sbr.rel (%p157) target = $region32
      $region31: #{tpu_custom_call.1} parent=5 // pred_region
        %s161 = ssub.s32 %s15, 1
        %s162 = sand.u32 %s28, 1
        %s163 = scalar_lea.sflag [#allocation3], %s162
        %s164 = sand.u32 %s28, 1
        %s165 = smul.addr %s164, 96
        %s166 = scalar_lea.vmem [#allocation2], %s165
        // Predicated region
        $region33: #{tpu_custom_call.1} parent=31 // pred_check
          %p167 = pneg %p41
        $region34: #{tpu_custom_call.1} parent=31 // pred_check_branch
          %169 = sbr.rel (%p167) target = $region36
        $region35: #{tpu_custom_call.1} parent=31 // pred_region
          %170 = dma.done %s163, 1536
        $region36: #{tpu_custom_call.1} parent=31 // pred_fallthru
          _
        %s171 = sand.u32 %s28, 1
        %s172 = scalar_lea.sflag [#allocation3], %s171
        %s173 = sand.u32 %s28, 1
        %s174 = smul.addr %s173, 96
        %s175 = scalar_lea.vmem [#allocation2], %s174
        %p176 = pneg %p41
        %p177 = pneg %p38
        %p178 = pneg %p62
        %p179 = pneg %p59
        %p180 = pneg %p83
        %p181 = pneg %p80
        %p182 = pneg %p109
        %p183 = pneg %p106
        %s184 = sand.u32 %s96, 1
        %s185 = scalar_lea.sflag [#allocation4], %s184
        %s186 = sand.u32 %s96, 1
        %s187 = smul.addr %s186, 96
        %s188 = scalar_lea.vmem [#allocation5], %s187
        %v189 = vld [vmem:[%s166] sm:$0xff]
        %v190 = vld [vmem:[%s166 + $0x8] sm:$0xff]
        %v191 = vld [vmem:[%s166 + $0x10] sm:$0xff]
        %v192 = vld [vmem:[%s166 + $0x18] sm:$0xff]
        %v193 = vld [vmem:[%s166 + $0x20] sm:$0xff]
        %v194 = vld [vmem:[%s166 + $0x28] sm:$0xff]
        %v195 = vld [vmem:[%s166 + $0x30] sm:$0xff]
        %v196 = vld [vmem:[%s166 + $0x38] sm:$0xff]
        %v197 = vld [vmem:[%s166 + $0x40] sm:$0xff]
        %v198 = vld [vmem:[%s166 + $0x48] sm:$0xff]
        %v199 = vld [vmem:[%s166 + $0x50] sm:$0xff]
        %v200 = vld [vmem:[%s166 + $0x58] sm:$0xff]
        %v201 = vadd.f32 %v189, %v190
        %vm202 = vcmask 261120
        %v203 = vsel %vm202, %v191, 0.0
        %v204 = vadd.f32 %v201, %v203
        %205 = vadd.xlane.f32.xlu0 %v204
        %v206 = vpop.xlane.xlu0 %205
        %v207 = vadd.f32 %v192, %v193
        %v208 = vsel %vm202, %v194, 0.0
        %v209 = vadd.f32 %v207, %v208
        %210 = vadd.xlane.f32.xlu0 %v209
        %v211 = vpop.xlane.xlu0 %210
        %v212 = vadd.f32 %v195, %v196
        %v213 = vsel %vm202, %v197, 0.0
        %v214 = vadd.f32 %v212, %v213
        %215 = vadd.xlane.f32.xlu0 %v214
        %v216 = vpop.xlane.xlu0 %215
        %v217 = vadd.f32 %v198, %v199
        %v218 = vsel %vm202, %v200, 0.0
        %v219 = vadd.f32 %v217, %v218
        %220 = vadd.xlane.f32.xlu0 %v219
        %v221 = vpop.xlane.xlu0 %220
        %v222 = vmul.f32 %v206, 0.0034722222
        %v223 = vmul.f32 %v211, 0.0034722222
        %v224 = vmul.f32 %v216, 0.0034722222
        %v225 = vmul.f32 %v221, 0.0034722222
        %v226 = vmax.f32 %v189, %v190
        %v227 = vsel %vm202, %v191, -inf
        %v228 = vmax.f32 %v226, %v227
        %229 = vmax.xlane.f32.xlu0 %v228
        %v230 = vpop.xlane.xlu0 %229
        %v231 = vmax.f32 %v192, %v193
        %v232 = vsel %vm202, %v194, -inf
        %v233 = vmax.f32 %v231, %v232
        %234 = vmax.xlane.f32.xlu0 %v233
        %v235 = vpop.xlane.xlu0 %234
        %v236 = vmax.f32 %v195, %v196
        %v237 = vsel %vm202, %v197, -inf
        %v238 = vmax.f32 %v236, %v237
        %239 = vmax.xlane.f32.xlu0 %v238
        %v240 = vpop.xlane.xlu0 %239
        %v241 = vmax.f32 %v198, %v199
        %v242 = vsel %vm202, %v200, -inf
        %v243 = vmax.f32 %v241, %v242
        %244 = vmax.xlane.f32.xlu0 %v243
        %v245 = vpop.xlane.xlu0 %244
        %v246 = vld [vmem:[%s1] sm:$0x3]
        %v247 = vld [vmem:[%s2] sm:$0xff]
        %v248 = vld [vmem:[%s2 + $0x8] sm:$0xff]
        %v249 = vld [vmem:[%s2 + $0x10] sm:$0xff]
        %v250 = vld [vmem:[%s2 + $0x18] sm:$0xff]
        %v252 = vsel %vm202, %v246, 0
        %254 = vmatprep.subr.mxu0 0.0
        %255 = vmatpush1.msra.mxu0 %v222
        %256 = vmatprep.subr.mxu0 0.0
        %257 = vmatpush1.msra.mxu0 %v223
        %258 = vmatprep.subr.mxu0 0.0
        %259 = vmatpush1.msra.mxu0 %v224
        %260 = vmatprep.subr.mxu0 0.0
        %261 = vmatpush1.msra.mxu0 %v225
        %262 = vmatprep.subr.mxu0 0.0
        %263 = vmatpush1.msra.mxu0 0.0
        %264 = vmatprep.subr.mxu0 0.0
        %265 = vmatpush1.msra.mxu0 0.0
        %266 = vmatprep.subr.mxu0 0.0
        %267 = vmatpush1.msra.mxu0 0.0
        %268 = vmatprep.subr.mxu0 0.0
        %269 = vmatpush1.msra.mxu0 0.0
        %270 = vmatprep.subr.mxu0 0.0
        %271 = vmatpush1.msra.mxu0 0.0
        %272 = vmatprep.subr.mxu0 0.0
        %273 = vmatpush1.msra.mxu0 0.0
        %274 = vmatprep.subr.mxu0 0.0
        %275 = vmatpush1.msra.mxu0 0.0
        %276 = vmatprep.subr.mxu0 0.0
        %277 = vmatpush1.msra.mxu0 0.0
        %278 = vmatprep.subr.mxu0 0.0
        %279 = vmatpush1.msra.mxu0 0.0
        %280 = vmatprep.subr.mxu0 0.0
        %281 = vmatpush1.msra.mxu0 0.0
        %282 = vmatprep.subr.mxu0 0.0
        %283 = vmatpush1.msra.mxu0 0.0
        %284 = vmatprep.subr.mxu0 0.0
        %285 = vmatpush1.msra.mxu0 0.0
        %286 = vmatprep.subr.mxu0 0.0
        %287 = vmatpush1.msra.mxu0 0.0
        %288 = vmatprep.subr.mxu0 0.0
        %289 = vmatpush1.msra.mxu0 0.0
        %290 = vmatprep.subr.mxu0 0.0
        %291 = vmatpush1.msra.mxu0 0.0
        %292 = vmatprep.subr.mxu0 0.0
        %293 = vmatpush1.msra.mxu0 0.0
        %294 = vmatprep.subr.mxu0 0.0
        %295 = vmatpush1.msra.mxu0 0.0
        %296 = vmatprep.subr.mxu0 0.0
        %297 = vmatpush1.msra.mxu0 0.0
        %298 = vmatprep.subr.mxu0 0.0
        %299 = vmatpush1.msra.mxu0 0.0
        %300 = vmatprep.subr.mxu0 0.0
        %301 = vmatpush1.msra.mxu0 0.0
        %302 = vmatprep.subr.mxu0 0.0
        %303 = vmatpush1.msra.mxu0 0.0
        %304 = vmatprep.subr.mxu0 0.0
        %305 = vmatpush1.msra.mxu0 0.0
        %306 = vmatprep.subr.mxu0 0.0
        %307 = vmatpush1.msra.mxu0 0.0
        %308 = vmatprep.subr.mxu0 0.0
        %309 = vmatpush1.msra.mxu0 0.0
        %310 = vmatprep.subr.mxu0 0.0
        %311 = vmatpush1.msra.mxu0 0.0
        %312 = vmatprep.subr.mxu0 0.0
        %313 = vmatpush1.msra.mxu0 0.0
        %314 = vmatprep.subr.mxu0 0.0
        %315 = vmatpush1.msra.mxu0 0.0
        %316 = vmatprep.subr.mxu0 0.0
        %317 = vmatpush1.msra.mxu0 0.0
        %318 = vmatprep.mubr.f32.mxu0 0.0
        %319 = vmatmul.mubr.f32.gmra.mrb[0].mxu0 %v252
        %v320 = vpop.f32.mrb[0].mxu0
        %v321 = vadd.f32 0.0, %v320
        %v322 = vpop.f32.mrb[0].mxu0
        %323 = vdwg.mxu0
        %v324 = vmax.f32 %v321, 0.0
        %325 = vmatprep.subr.mxu0 0.0
        %326 = vmatpush1.msra.mxu0 %v230
        %327 = vmatprep.subr.mxu0 0.0
        %328 = vmatpush1.msra.mxu0 %v235
        %329 = vmatprep.subr.mxu0 0.0
        %330 = vmatpush1.msra.mxu0 %v240
        %331 = vmatprep.subr.mxu0 0.0
        %332 = vmatpush1.msra.mxu0 %v245
        %333 = vmatprep.subr.mxu0 0.0
        %334 = vmatpush1.msra.mxu0 0.0
        %335 = vmatprep.subr.mxu0 0.0
        %336 = vmatpush1.msra.mxu0 0.0
        %337 = vmatprep.subr.mxu0 0.0
        %338 = vmatpush1.msra.mxu0 0.0
        %339 = vmatprep.subr.mxu0 0.0
        %340 = vmatpush1.msra.mxu0 0.0
        %341 = vmatprep.subr.mxu0 0.0
        %342 = vmatpush1.msra.mxu0 0.0
        %343 = vmatprep.subr.mxu0 0.0
        %344 = vmatpush1.msra.mxu0 0.0
        %345 = vmatprep.subr.mxu0 0.0
        %346 = vmatpush1.msra.mxu0 0.0
        %347 = vmatprep.subr.mxu0 0.0
        %348 = vmatpush1.msra.mxu0 0.0
        %349 = vmatprep.subr.mxu0 0.0
        %350 = vmatpush1.msra.mxu0 0.0
        %351 = vmatprep.subr.mxu0 0.0
        %352 = vmatpush1.msra.mxu0 0.0
        %353 = vmatprep.subr.mxu0 0.0
        %354 = vmatpush1.msra.mxu0 0.0
        %355 = vmatprep.subr.mxu0 0.0
        %356 = vmatpush1.msra.mxu0 0.0
        %357 = vmatprep.subr.mxu0 0.0
        %358 = vmatpush1.msra.mxu0 0.0
        %359 = vmatprep.subr.mxu0 0.0
        %360 = vmatpush1.msra.mxu0 0.0
        %361 = vmatprep.subr.mxu0 0.0
        %362 = vmatpush1.msra.mxu0 0.0
        %363 = vmatprep.subr.mxu0 0.0
        %364 = vmatpush1.msra.mxu0 0.0
        %365 = vmatprep.subr.mxu0 0.0
        %366 = vmatpush1.msra.mxu0 0.0
        %367 = vmatprep.subr.mxu0 0.0
        %368 = vmatpush1.msra.mxu0 0.0
        %369 = vmatprep.subr.mxu0 0.0
        %370 = vmatpush1.msra.mxu0 0.0
        %371 = vmatprep.subr.mxu0 0.0
        %372 = vmatpush1.msra.mxu0 0.0
        %373 = vmatprep.subr.mxu0 0.0
        %374 = vmatpush1.msra.mxu0 0.0
        %375 = vmatprep.subr.mxu0 0.0
        %376 = vmatpush1.msra.mxu0 0.0
        %377 = vmatprep.subr.mxu0 0.0
        %378 = vmatpush1.msra.mxu0 0.0
        %379 = vmatprep.subr.mxu0 0.0
        %380 = vmatpush1.msra.mxu0 0.0
        %381 = vmatprep.subr.mxu0 0.0
        %382 = vmatpush1.msra.mxu0 0.0
        %383 = vmatprep.subr.mxu0 0.0
        %384 = vmatpush1.msra.mxu0 0.0
        %385 = vmatprep.subr.mxu0 0.0
        %386 = vmatpush1.msra.mxu0 0.0
        %387 = vmatprep.subr.mxu0 0.0
        %388 = vmatpush1.msra.mxu0 0.0
        %389 = vmatprep.mubr.f32.mxu0 0.0
        %390 = vmatmul.mubr.f32.gmra.mrb[0].mxu0 %v252
        %v391 = vpop.f32.mrb[0].mxu0
        %v392 = vadd.f32 0.0, %v391
        %v393 = vpop.f32.mrb[0].mxu0
        %394 = vdwg.mxu0
        %v395 = vmax.f32 %v392, 0.0
        %vm396 = vcmask 15360
        %v398 = vsel %vm396, %v247, 0
        %v401 = vsel %vm396, %v248, 0
        %v404 = vsel %vm396, %v249, 0
        %v407 = vsel %vm396, %v250, 0
        %vm409 = vcmask 1041408
        %v411 = vsel %vm409, %v395, 0
        %413 = vmatprep.subr.mxu0 0.0
        %414 = vmatpush1.msra.mxu0 %v411
        %415 = vmatprep.subr.mxu0 0.0
        %416 = vmatpush1.msra.mxu0 0.0
        %417 = vmatprep.subr.mxu0 0.0
        %418 = vmatpush1.msra.mxu0 0.0
        %419 = vmatprep.subr.mxu0 0.0
        %420 = vmatpush1.msra.mxu0 0.0
        %421 = vmatprep.subr.mxu0 0.0
        %422 = vmatpush1.msra.mxu0 0.0
        %423 = vmatprep.subr.mxu0 0.0
        %424 = vmatpush1.msra.mxu0 0.0
        %425 = vmatprep.subr.mxu0 0.0
        %426 = vmatpush1.msra.mxu0 0.0
        %427 = vmatprep.subr.mxu0 0.0
        %428 = vmatpush1.msra.mxu0 0.0
        %429 = vmatprep.subr.mxu0 0.0
        %430 = vmatpush1.msra.mxu0 0.0
        %431 = vmatprep.subr.mxu0 0.0
        %432 = vmatpush1.msra.mxu0 0.0
        %433 = vmatprep.subr.mxu0 0.0
        %434 = vmatpush1.msra.mxu0 0.0
        %435 = vmatprep.subr.mxu0 0.0
        %436 = vmatpush1.msra.mxu0 0.0
        %437 = vmatprep.subr.mxu0 0.0
        %438 = vmatpush1.msra.mxu0 0.0
        %439 = vmatprep.subr.mxu0 0.0
        %440 = vmatpush1.msra.mxu0 0.0
        %441 = vmatprep.subr.mxu0 0.0
        %442 = vmatpush1.msra.mxu0 0.0
        %443 = vmatprep.subr.mxu0 0.0
        %444 = vmatpush1.msra.mxu0 0.0
        %445 = vmatprep.subr.mxu0 0.0
        %446 = vmatpush1.msra.mxu0 0.0
        %447 = vmatprep.subr.mxu0 0.0
        %448 = vmatpush1.msra.mxu0 0.0
        %449 = vmatprep.subr.mxu0 0.0
        %450 = vmatpush1.msra.mxu0 0.0
        %451 = vmatprep.subr.mxu0 0.0
        %452 = vmatpush1.msra.mxu0 0.0
        %453 = vmatprep.subr.mxu0 0.0
        %454 = vmatpush1.msra.mxu0 0.0
        %455 = vmatprep.subr.mxu0 0.0
        %456 = vmatpush1.msra.mxu0 0.0
        %457 = vmatprep.subr.mxu0 0.0
        %458 = vmatpush1.msra.mxu0 0.0
        %459 = vmatprep.subr.mxu0 0.0
        %460 = vmatpush1.msra.mxu0 0.0
        %461 = vmatprep.subr.mxu0 0.0
        %462 = vmatpush1.msra.mxu0 0.0
        %463 = vmatprep.subr.mxu0 0.0
        %464 = vmatpush1.msra.mxu0 0.0
        %465 = vmatprep.subr.mxu0 0.0
        %466 = vmatpush1.msra.mxu0 0.0
        %467 = vmatprep.subr.mxu0 0.0
        %468 = vmatpush1.msra.mxu0 0.0
        %469 = vmatprep.subr.mxu0 0.0
        %470 = vmatpush1.msra.mxu0 0.0
        %471 = vmatprep.subr.mxu0 0.0
        %472 = vmatpush1.msra.mxu0 0.0
        %473 = vmatprep.subr.mxu0 0.0
        %474 = vmatpush1.msra.mxu0 0.0
        %475 = vmatprep.subr.mxu0 0.0
        %476 = vmatpush1.msra.mxu0 0.0
        %477 = vmatprep.mubr.f32.mxu0 0.0
        %478 = vmatmul.mubr.f32.gmra.mrb[0].mxu0 %v398
        %v479 = vpop.f32.mrb[0].mxu0
        %v480 = vadd.f32 0.0, %v479
        %v481 = vpop.f32.mrb[0].mxu0
        %482 = vmatprep.mubr.f32.mxu0 0.0
        %483 = vmatmul.mubr.f32.gmra.mrb[0].mxu0 %v401
        %v484 = vpop.f32.mrb[0].mxu0
        %v485 = vadd.f32 0.0, %v484
        %v486 = vpop.f32.mrb[0].mxu0
        %487 = vmatprep.mubr.f32.mxu0 0.0
        %488 = vmatmul.mubr.f32.gmra.mrb[0].mxu0 %v404
        %v489 = vpop.f32.mrb[0].mxu0
        %v490 = vadd.f32 0.0, %v489
        %v491 = vpop.f32.mrb[0].mxu0
        %492 = vmatprep.mubr.f32.mxu0 0.0
        %493 = vmatmul.mubr.f32.gmra.mrb[0].mxu0 %v407
        %v494 = vpop.f32.mrb[0].mxu0
        %v495 = vadd.f32 0.0, %v494
        %v496 = vpop.f32.mrb[0].mxu0
        %497 = vdwg.mxu0
        %v499 = vsel %vm409, %v324, 0
        %501 = vmatprep.subr.mxu0 0.0
        %502 = vmatpush1.msra.mxu0 %v499
        %503 = vmatprep.subr.mxu0 0.0
        %504 = vmatpush1.msra.mxu0 0.0
        %505 = vmatprep.subr.mxu0 0.0
        %506 = vmatpush1.msra.mxu0 0.0
        %507 = vmatprep.subr.mxu0 0.0
        %508 = vmatpush1.msra.mxu0 0.0
        %509 = vmatprep.subr.mxu0 0.0
        %510 = vmatpush1.msra.mxu0 0.0
        %511 = vmatprep.subr.mxu0 0.0
        %512 = vmatpush1.msra.mxu0 0.0
        %513 = vmatprep.subr.mxu0 0.0
        %514 = vmatpush1.msra.mxu0 0.0
        %515 = vmatprep.subr.mxu0 0.0
        %516 = vmatpush1.msra.mxu0 0.0
        %517 = vmatprep.subr.mxu0 0.0
        %518 = vmatpush1.msra.mxu0 0.0
        %519 = vmatprep.subr.mxu0 0.0
        %520 = vmatpush1.msra.mxu0 0.0
        %521 = vmatprep.subr.mxu0 0.0
        %522 = vmatpush1.msra.mxu0 0.0
        %523 = vmatprep.subr.mxu0 0.0
        %524 = vmatpush1.msra.mxu0 0.0
        %525 = vmatprep.subr.mxu0 0.0
        %526 = vmatpush1.msra.mxu0 0.0
        %527 = vmatprep.subr.mxu0 0.0
        %528 = vmatpush1.msra.mxu0 0.0
        %529 = vmatprep.subr.mxu0 0.0
        %530 = vmatpush1.msra.mxu0 0.0
        %531 = vmatprep.subr.mxu0 0.0
        %532 = vmatpush1.msra.mxu0 0.0
        %533 = vmatprep.subr.mxu0 0.0
        %534 = vmatpush1.msra.mxu0 0.0
        %535 = vmatprep.subr.mxu0 0.0
        %536 = vmatpush1.msra.mxu0 0.0
        %537 = vmatprep.subr.mxu0 0.0
        %538 = vmatpush1.msra.mxu0 0.0
        %539 = vmatprep.subr.mxu0 0.0
        %540 = vmatpush1.msra.mxu0 0.0
        %541 = vmatprep.subr.mxu0 0.0
        %542 = vmatpush1.msra.mxu0 0.0
        %543 = vmatprep.subr.mxu0 0.0
        %544 = vmatpush1.msra.mxu0 0.0
        %545 = vmatprep.subr.mxu0 0.0
        %546 = vmatpush1.msra.mxu0 0.0
        %547 = vmatprep.subr.mxu0 0.0
        %548 = vmatpush1.msra.mxu0 0.0
        %549 = vmatprep.subr.mxu0 0.0
        %550 = vmatpush1.msra.mxu0 0.0
        %551 = vmatprep.subr.mxu0 0.0
        %552 = vmatpush1.msra.mxu0 0.0
        %553 = vmatprep.subr.mxu0 0.0
        %554 = vmatpush1.msra.mxu0 0.0
        %555 = vmatprep.subr.mxu0 0.0
        %556 = vmatpush1.msra.mxu0 0.0
        %557 = vmatprep.subr.mxu0 0.0
        %558 = vmatpush1.msra.mxu0 0.0
        %559 = vmatprep.subr.mxu0 0.0
        %560 = vmatpush1.msra.mxu0 0.0
        %561 = vmatprep.subr.mxu0 0.0
        %562 = vmatpush1.msra.mxu0 0.0
        %563 = vmatprep.subr.mxu0 0.0
        %564 = vmatpush1.msra.mxu0 0.0
        %565 = vmatprep.mubr.f32.mxu0 0.0
        %566 = vmatmul.mubr.f32.gmra.mrb[0].mxu0 %v398
        %v567 = vpop.f32.mrb[0].mxu0
        %v568 = vadd.f32 %v480, %v567
        %v569 = vpop.f32.mrb[0].mxu0
        %570 = vmatprep.mubr.f32.mxu0 0.0
        %571 = vmatmul.mubr.f32.gmra.mrb[0].mxu0 %v401
        %v572 = vpop.f32.mrb[0].mxu0
        %v573 = vadd.f32 %v485, %v572
        %v574 = vpop.f32.mrb[0].mxu0
        %575 = vmatprep.mubr.f32.mxu0 0.0
        %576 = vmatmul.mubr.f32.gmra.mrb[0].mxu0 %v404
        %v577 = vpop.f32.mrb[0].mxu0
        %v578 = vadd.f32 %v490, %v577
        %v579 = vpop.f32.mrb[0].mxu0
        %580 = vmatprep.mubr.f32.mxu0 0.0
        %581 = vmatmul.mubr.f32.gmra.mrb[0].mxu0 %v407
        %v582 = vpop.f32.mrb[0].mxu0
        %v583 = vadd.f32 %v495, %v582
        %v584 = vpop.f32.mrb[0].mxu0
        %585 = vdwg.mxu0
        %v586 = vxor.u32 %v568, 2147483648
        %v587 = vxor.u32 %v573, 2147483648
        %v588 = vxor.u32 %v578, 2147483648
        %v589 = vxor.u32 %v583, 2147483648
        %v590 = vmul.f32 %v586, 1.442695
        %v591 = vpow.pop %v590
        %v592 = vmul.f32 %v587, 1.442695
        %v593 = vpow.pop %v592
        %v594 = vmul.f32 %v588, 1.442695
        %v595 = vpow.pop %v594
        %v596 = vmul.f32 %v589, 1.442695
        %v597 = vpow.pop %v596
        %v598 = vadd.f32 %v591, 1.0
        %v599 = vadd.f32 %v593, 1.0
        %v600 = vadd.f32 %v595, 1.0
        %v601 = vadd.f32 %v597, 1.0
        %v602 = vrcp.pop %v598
        %v603 = vmul.f32 1.0, %v602
        %v604 = vrcp.pop %v599
        %v605 = vmul.f32 1.0, %v604
        %v606 = vrcp.pop %v600
        %v607 = vmul.f32 1.0, %v606
        %v608 = vrcp.pop %v601
        %v609 = vmul.f32 1.0, %v608
        %611 = vset.pattern.permute.xlu0 0
        %612 = vperm.xlu0 %611, %v603
        %v613 = vpop.permute.xlu0 %612
        %616 = vset.pattern.permute.xlu0 0
        %617 = vperm.xlu0 %616, %v605
        %v618 = vpop.permute.xlu0 %617
        %621 = vset.pattern.permute.xlu0 0
        %622 = vperm.xlu0 %621, %v607
        %v623 = vpop.permute.xlu0 %622
        %626 = vset.pattern.permute.xlu0 0
        %627 = vperm.xlu0 %626, %v609
        %v628 = vpop.permute.xlu0 %627
        %v630 = vmul.f32 %v189, %v613
        %v631 = vmul.f32 %v190, %v613
        %v632 = vmul.f32 %v191, %v613
        %v633 = vmul.f32 %v192, %v618
        %v634 = vmul.f32 %v193, %v618
        %v635 = vmul.f32 %v194, %v618
        %v636 = vmul.f32 %v195, %v623
        %v637 = vmul.f32 %v196, %v623
        %v638 = vmul.f32 %v197, %v623
        %v639 = vmul.f32 %v198, %v628
        %v640 = vmul.f32 %v199, %v628
        %v641 = vmul.f32 %v200, %v628
        %642 = vst [vmem:[%s188] sm:$0xff] %v630
        %643 = vst [vmem:[%s188 + $0x8] sm:$0xff] %v631
        %644 = vst.msk [vmem:[%s188 + $0x10] sm:$0xff] %vm202, %v632
        %645 = vst [vmem:[%s188 + $0x18] sm:$0xff] %v633
        %646 = vst [vmem:[%s188 + $0x20] sm:$0xff] %v634
        %647 = vst.msk [vmem:[%s188 + $0x28] sm:$0xff] %vm202, %v635
        %648 = vst [vmem:[%s188 + $0x30] sm:$0xff] %v636
        %649 = vst [vmem:[%s188 + $0x38] sm:$0xff] %v637
        %650 = vst.msk [vmem:[%s188 + $0x40] sm:$0xff] %vm202, %v638
        %651 = vst [vmem:[%s188 + $0x48] sm:$0xff] %v639
        %652 = vst [vmem:[%s188 + $0x50] sm:$0xff] %v640
        %653 = vst.msk [vmem:[%s188 + $0x58] sm:$0xff] %vm202, %v641
        %s654 = sand.u32 %s96, 1
        %s655 = scalar_lea.sflag [#allocation4], %s654
        %s656 = sand.u32 %s96, 1
        %s657 = smul.addr %s656, 96
        %s658 = scalar_lea.vmem [#allocation5], %s657
        // Predicated region
        $region37: #{tpu_custom_call.1} parent=31 // pred_check
          %p659 = pneg %p106
        $region38: #{tpu_custom_call.1} parent=31 // pred_check_branch
          %661 = sbr.rel (%p659) target = $region40
        $region39: #{tpu_custom_call.1} parent=31 // pred_region
          %s663 = ssub.s32 1536, 1536
          %664 = vsyncadd %s655, %s663
          %s665 = smul.addr %s20, 12
          %s666 = smul.addr %s665, 128
          %s667 = scalar_lea.hbm %s3, %s666
          %s668 = sshll.u32 %s658, 4
          %s669 = int_to_ptr.vmem [resolvable:$true] %s668
          %674 = dma.vmem_to_hbm [thread:$0]  %s669, 1536, %s667, %s655, 384, 384, 24
        $region40: #{tpu_custom_call.1} parent=31 // pred_fallthru
          _
      $region32: #{tpu_custom_call.1} parent=5 // pred_fallthru
        _
      %p675 = scmp.le.s32.totalorder 2, %s15
      // Predicated region
      $region41: #{tpu_custom_call.1} parent=5 // pred_check
        %p676 = pneg %p675
      $region42: #{tpu_custom_call.1} parent=5 // pred_check_branch
        %678 = sbr.rel (%p676) target = $region44
      $region43: #{tpu_custom_call.1} parent=5 // pred_region
        %s679 = ssub.s32 %s15, 2
        // Predicated region
        $region45: #{tpu_custom_call.1} parent=43 // pred_check
          %p680 = pneg %p112
        $region46: #{tpu_custom_call.1} parent=43 // pred_check_branch
          %682 = sbr.rel (%p680) target = $region48
        $region47: #{tpu_custom_call.1} parent=43 // pred_region
          %s683 = sand.u32 %s97, 1
          %s684 = scalar_lea.sflag [#allocation4], %s683
          %s685 = sand.u32 %s97, 1
          %s686 = smul.addr %s685, 96
          %s687 = scalar_lea.vmem [#allocation5], %s686
          %688 = dma.done %s684, 1536
        $region48: #{tpu_custom_call.1} parent=43 // pred_fallthru
          _
      $region44: #{tpu_custom_call.1} parent=5 // pred_fallthru
        _
    $region6: #{tpu_custom_call.1} parent=1 // loop_footer
      %s19 = sadd.s32 1, %s15
    $region7: #{tpu_custom_call.1} parent=1 // loop_footer_branch
      %14 = sbr.rel target = $region3
    $region8: #{tpu_custom_call.1} parent=1 // loop_exit
      _
    %689 = vsyncpa [#allocation3], 1
    %s690 = scalar_lea.sflag [#allocation3], 1
    %691 = vsyncpa %s690, 1
    %692 = vsyncpa [#allocation4], 1
    %s693 = scalar_lea.sflag [#allocation4], 1
    %694 = vsyncpa %s693, 1

</llo_original>
